<compile_context>
chip_gen: v7x
topology: tpu7x:2x2x1
jax: 0.10.0
libtpu: 0.0.40
codegen_flags: <defaults>
</compile_context>

<pallas_src>
import jax
import jax.numpy as jnp
from jax.experimental import pallas as pl
from jax.experimental.pallas import tpu as pltpu

IN_DIM = 100     # logical fc1 in_features
HID_DIM = 200    # logical fc1 out_features / fc2 in_features
OUT_DIM = 2      # logical fc2 out_features

HID_PAD = 256    # padded hidden dim -> lane-dense intermediate (2x128 lanes)

MAX_TB = 1024    # batch tile upper bound (85%+ of HBM roofline vs ~63% at 256)


def _round_up(x, m):
    return ((x + m - 1) // m) * m


def predictor_kernel(x_ref, w1_ref, b1_ref, w2_ref, b2_ref, o_ref):
    # Fused two-layer MLP: both matmuls on the MXU, bias+ReLU on the VPU,
    # nothing spills to HBM in between.  Weights stay resident across the
    # batch grid (block index (0,0) every step).
    x = x_ref[...]                                                    # (tb, 100)
    h = jnp.dot(x, w1_ref[...], preferred_element_type=jnp.float32)  # (tb, 256)
    h = jnp.maximum(h + b1_ref[...], 0.0)                            # ReLU; padded cols stay 0
    y = jnp.dot(h, w2_ref[...], preferred_element_type=jnp.float32)  # (tb, 2)
    o_ref[...] = (y + b2_ref[...]).astype(o_ref.dtype)               # logical 2-wide store


def prepare_params(w1, b1, w2, b2):
    """One-time zero-padding of parameters.

    Expects weights stored (in_features, out_features), i.e. PyTorch's
    nn.Linear weight transposed once at setup so the kernel computes
    y = x @ W + b.  Hidden dim is padded to HID_PAD with zeros (neutral:
    bias 0, ReLU(0)=0, zero rows in w2).
    """
    assert w1.shape == (IN_DIM, HID_DIM), f"w1 must be (in,out); got {w1.shape}"
    assert b1.shape == (HID_DIM,)
    assert w2.shape == (HID_DIM, OUT_DIM), f"w2 must be (in,out); got {w2.shape}"
    assert b2.shape == (OUT_DIM,)

    w1_p = jnp.zeros((IN_DIM, HID_PAD), jnp.float32).at[:, :HID_DIM].set(w1)
    b1_p = jnp.zeros((1, HID_PAD), jnp.float32).at[0, :HID_DIM].set(b1)
    w2_p = jnp.zeros((HID_PAD, OUT_DIM), jnp.float32).at[:HID_DIM, :].set(w2)
    b2_p = b2.reshape(1, OUT_DIM).astype(jnp.float32)
    return w1_p, b1_p, w2_p, b2_p


def predictor_forward(x, padded_params):
    w1_p, b1_p, w2_p, b2_p = padded_params
    B = x.shape[0]

    # Batch tile: large (overhead amortization), sublane-aligned, and capped so
    # that for B > tile the grid has >= 2 steps (both v7x TensorCores busy).
    tb = min(MAX_TB, max(8, _round_up(pl.cdiv(B, 2), 8)))
    grid_b = pl.cdiv(B, tb)   # ragged final block handled by Pallas masking

    flops = 2 * B * (IN_DIM * HID_PAD + HID_PAD * OUT_DIM)
    bytes_accessed = 4 * (B * IN_DIM + B * OUT_DIM
                          + IN_DIM * HID_PAD + HID_PAD
                          + HID_PAD * OUT_DIM + OUT_DIM)

    out = pl.pallas_call(
        predictor_kernel,
        out_shape=jax.ShapeDtypeStruct((B, OUT_DIM), jnp.float32),
        grid_spec=pl.GridSpec(
            grid=(grid_b,),
            in_specs=[
                # x streamed per batch tile; last dim == full array dim (100).
                pl.BlockSpec((tb, IN_DIM), lambda i: (i, 0)),
                # Resident weights / biases.
                pl.BlockSpec((IN_DIM, HID_PAD), lambda i: (0, 0)),
                pl.BlockSpec((1, HID_PAD), lambda i: (0, 0)),
                pl.BlockSpec((HID_PAD, OUT_DIM), lambda i: (0, 0)),
                pl.BlockSpec((1, OUT_DIM), lambda i: (0, 0)),
            ],
            # Output block last dim == full array dim (2): logical-width store,
            # no 128-wide padded writeback and no post-kernel slice pass.
            out_specs=pl.BlockSpec((tb, OUT_DIM), lambda i: (i, 0)),
        ),
        compiler_params=pltpu.CompilerParams(
            dimension_semantics=("parallel",),
        ),
        cost_estimate=pl.CostEstimate(
            flops=flops, transcendentals=0, bytes_accessed=bytes_accessed),
    )(x.astype(jnp.float32), w1_p, b1_p, w2_p, b2_p)

    return out


def reference_forward(x, w1, b1, w2, b2):
    h = jnp.maximum(x @ w1 + b1, 0.0)
    return h @ w2 + b2


if __name__ == "__main__":
    key = jax.random.PRNGKey(0)
    kx, k1, k2, k3, k4 = jax.random.split(key, 5)

    B = 8
    x = jax.random.normal(kx, (B, IN_DIM), dtype=jnp.float32)

    # Deterministic parameter init (uniform(-1/sqrt(fan_in), 1/sqrt(fan_in)),
    # matching nn.Linear's default scheme shape-wise; stored as (in, out)).
    bound1 = 1.0 / jnp.sqrt(IN_DIM)
    w1 = jax.random.uniform(k1, (IN_DIM, HID_DIM), jnp.float32, -bound1, bound1)
    b1 = jax.random.uniform(k2, (HID_DIM,), jnp.float32, -bound1, bound1)

    bound2 = 1.0 / jnp.sqrt(HID_DIM)
    w2 = jax.random.uniform(k3, (HID_DIM, OUT_DIM), jnp.float32, -bound2, bound2)
    b2 = jax.random.uniform(k4, (OUT_DIM,), jnp.float32, -bound2, bound2)

    padded_params = prepare_params(w1, b1, w2, b2)   # one-time pad
    out = predictor_forward(x, padded_params)
    out = jax.block_until_ready(out)

    ref = reference_forward(x, w1, b1, w2, b2)
    assert out.shape == (B, OUT_DIM)
    assert jnp.allclose(out, ref, atol=1e-4, rtol=1e-4), "mismatch vs reference"

    print("KERNEL_OK")
</pallas_src>

<mosaic_0001>
module attributes {stable_mosaic.version = 11 : i64} {
  func.func @predictor_kernel(%arg0: i32, %arg1: memref<8x100xf32, #tpu.memory_space<vmem>>, %arg2: memref<100x256xf32, #tpu.memory_space<vmem>>, %arg3: memref<1x256xf32, #tpu.memory_space<vmem>>, %arg4: memref<256x2xf32, #tpu.memory_space<vmem>>, %arg5: memref<1x2xf32, #tpu.memory_space<vmem>>, %arg6: memref<8x2xf32, #tpu.memory_space<vmem>>) attributes {dimension_semantics = [#tpu.dimension_semantics<parallel>], iteration_bounds = array<i64: 1>, scalar_prefetch = 0 : i64, scratch_operands = 0 : i64, tpu.core_type = #tpu.core_type<tc>, window_params = [{transform_indices = @transform_0, window_bounds = array<i64: 8, 100>}, {pipeline_mode = #tpu.pipeline_mode<synchronous>, transform_indices = @transform_1, window_bounds = array<i64: 100, 256>}, {pipeline_mode = #tpu.pipeline_mode<synchronous>, transform_indices = @transform_2, window_bounds = array<i64: 1, 256>}, {pipeline_mode = #tpu.pipeline_mode<synchronous>, transform_indices = @transform_3, window_bounds = array<i64: 256, 2>}, {pipeline_mode = #tpu.pipeline_mode<synchronous>, transform_indices = @transform_4, window_bounds = array<i64: 1, 2>}, {transform_indices = @transform_5, window_bounds = array<i64: 8, 2>}]} {
    %c0 = arith.constant 0 : index
    %c0_0 = arith.constant 0 : index
    %0 = vector.load %arg1[%c0, %c0_0] : memref<8x100xf32, #tpu.memory_space<vmem>>, vector<8x100xf32>
    %c0_1 = arith.constant 0 : index
    %c0_2 = arith.constant 0 : index
    %1 = vector.load %arg2[%c0_1, %c0_2] : memref<100x256xf32, #tpu.memory_space<vmem>>, vector<100x256xf32>
    %cst = arith.constant dense<0.000000e+00> : vector<8x256xf32>
    %2 = tpu.matmul %0, %1, %cst {dimension_numbers = #tpu.dot_dimension_numbers<[1], [0], [0], [1], [0, 0, 1, 1], [], []>} : vector<8x100xf32>, vector<100x256xf32>, vector<8x256xf32> -> vector<8x256xf32>
    %c0_3 = arith.constant 0 : index
    %c0_4 = arith.constant 0 : index
    %3 = vector.load %arg3[%c0_3, %c0_4] : memref<1x256xf32, #tpu.memory_space<vmem>>, vector<1x256xf32>
    %4 = vector.broadcast %3 : vector<1x256xf32> to vector<8x256xf32>
    %5 = arith.addf %2, %4 : vector<8x256xf32>
    %cst_5 = arith.constant 0.000000e+00 : f32
    %6 = vector.broadcast %cst_5 : f32 to vector<8x256xf32>
    %7 = arith.maximumf %5, %6 : vector<8x256xf32>
    %c0_6 = arith.constant 0 : index
    %c0_7 = arith.constant 0 : index
    %8 = vector.load %arg4[%c0_6, %c0_7] : memref<256x2xf32, #tpu.memory_space<vmem>>, vector<256x2xf32>
    %cst_8 = arith.constant dense<0.000000e+00> : vector<8x2xf32>
    %9 = tpu.matmul %7, %8, %cst_8 {dimension_numbers = #tpu.dot_dimension_numbers<[1], [0], [0], [1], [0, 0, 1, 1], [], []>} : vector<8x256xf32>, vector<256x2xf32>, vector<8x2xf32> -> vector<8x2xf32>
    %c0_9 = arith.constant 0 : index
    %c0_10 = arith.constant 0 : index
    %10 = vector.load %arg5[%c0_9, %c0_10] : memref<1x2xf32, #tpu.memory_space<vmem>>, vector<1x2xf32>
    %11 = vector.broadcast %10 : vector<1x2xf32> to vector<8x2xf32>
    %12 = arith.addf %9, %11 : vector<8x2xf32>
    %c0_11 = arith.constant 0 : index
    %c0_12 = arith.constant 0 : index
    %13 = vector.load %arg6[%c0_11, %c0_12] : memref<8x2xf32, #tpu.memory_space<vmem>>, vector<8x2xf32>
    tpu.vector_store %arg6[%c0_11, %c0_12], %12 {strides = array<i32>} : memref<8x2xf32, #tpu.memory_space<vmem>>, vector<8x2xf32>,
    return
  }
  func.func @transform_0(%arg0: i32) -> (i32, i32) {
    %c0_i32 = arith.constant 0 : i32
    %c0_i32_0 = arith.constant 0 : i32
    return %arg0, %c0_i32 : i32, i32
  }
  func.func @transform_1(%arg0: i32) -> (i32, i32) {
    %c0_i32 = arith.constant 0 : i32
    %c0_i32_0 = arith.constant 0 : i32
    %c0_i32_1 = arith.constant 0 : i32
    return %c0_i32, %c0_i32_0 : i32, i32
  }
  func.func @transform_2(%arg0: i32) -> (i32, i32) {
    %c0_i32 = arith.constant 0 : i32
    %c0_i32_0 = arith.constant 0 : i32
    %c0_i32_1 = arith.constant 0 : i32
    return %c0_i32, %c0_i32_0 : i32, i32
  }
  func.func @transform_3(%arg0: i32) -> (i32, i32) {
    %c0_i32 = arith.constant 0 : i32
    %c0_i32_0 = arith.constant 0 : i32
    %c0_i32_1 = arith.constant 0 : i32
    return %c0_i32, %c0_i32_0 : i32, i32
  }
  func.func @transform_4(%arg0: i32) -> (i32, i32) {
    %c0_i32 = arith.constant 0 : i32
    %c0_i32_0 = arith.constant 0 : i32
    %c0_i32_1 = arith.constant 0 : i32
    return %c0_i32, %c0_i32_0 : i32, i32
  }
  func.func @transform_5(%arg0: i32) -> (i32, i32) {
    %c0_i32 = arith.constant 0 : i32
    %c0_i32_0 = arith.constant 0 : i32
    return %arg0, %c0_i32 : i32, i32
  }
}

</mosaic_0001>

<llo_original>
// kernel: tpu_custom_call.1
$region0: #{tpu_custom_call.1}
  #allocation0 [shape = 'u32[]', space=smem, size = 0x4, offset = 0x4, fixed_abs, tag = 'smem constant byte address 0x4 - core index']
  #allocation1 [shape = 'u32[144,128]{1,0:T(1,128)}', space=vmem, size = 0x12000, scoped, tag = 'internal scratch']
  %s0 = inlined_call_operand.vmem [shape: f32[8,100], index: 0, kind: input, shape index: {}]
  %s1 = inlined_call_operand.vmem [shape: f32[100,256], index: 1, kind: input, shape index: {}]
  %s2 = inlined_call_operand.vmem [shape: f32[1,256], index: 2, kind: input, shape index: {}]
  %s3 = inlined_call_operand.vmem [shape: f32[256,2], index: 3, kind: input, shape index: {}]
  %s4 = inlined_call_operand.vmem [shape: f32[1,2], index: 4, kind: input, shape index: {}]
  %s5 = inlined_call_operand.vmem [shape: f32[8,2], index: 5, kind: output, shape index: {}]
  %s6 = sld [smem:[#allocation0]]
  $region30: #{tpu_custom_call.1} parent=0
    _
  %s8 = ssub.s32 1, %s6
  %s9 = scalar_select 0, %s8, %s6
  // Predicated region
  $region2: #{tpu_custom_call.1} parent=0 // pred_check
    _
  $region3: #{tpu_custom_call.1} parent=0 // pred_check_branch
    %11 = sbr.rel (0) target = $region5
  $region4: #{tpu_custom_call.1} parent=0 // pred_region
    _
  $region5: #{tpu_custom_call.1} parent=0 // pred_fallthru
    _
  // Predicated region
  $region6: #{tpu_custom_call.1} parent=0 // pred_check
    _
  $region7: #{tpu_custom_call.1} parent=0 // pred_check_branch
    %13 = sbr.rel (0) target = $region9
  $region8: #{tpu_custom_call.1} parent=0 // pred_region
    _
  $region9: #{tpu_custom_call.1} parent=0 // pred_fallthru
    _
  // Predicated region
  $region10: #{tpu_custom_call.1} parent=0 // pred_check
    _
  $region11: #{tpu_custom_call.1} parent=0 // pred_check_branch
    %15 = sbr.rel (0) target = $region13
  $region12: #{tpu_custom_call.1} parent=0 // pred_region
    _
  $region13: #{tpu_custom_call.1} parent=0 // pred_fallthru
    _
  // Predicated region
  $region14: #{tpu_custom_call.1} parent=0 // pred_check
    _
  $region15: #{tpu_custom_call.1} parent=0 // pred_check_branch
    %17 = sbr.rel (0) target = $region17
  $region16: #{tpu_custom_call.1} parent=0 // pred_region
    _
  $region17: #{tpu_custom_call.1} parent=0 // pred_fallthru
    _
  // Predicated region
  $region18: #{tpu_custom_call.1} parent=0 // pred_check
    _
  $region19: #{tpu_custom_call.1} parent=0 // pred_check_branch
    %19 = sbr.rel (0) target = $region21
  $region20: #{tpu_custom_call.1} parent=0 // pred_region
    _
  $region21: #{tpu_custom_call.1} parent=0 // pred_fallthru
    _
  %v20 = vld [vmem:[%s0] sm:$0xff]
  %v21 = vld [vmem:[%s1] sm:$0xff]
  %v22 = vld [vmem:[%s1 + $0x8] sm:$0xff]
  %v23 = vld [vmem:[%s1 + $0x10] sm:$0xff]
  %v24 = vld [vmem:[%s1 + $0x18] sm:$0xff]
  %v25 = vld [vmem:[%s1 + $0x20] sm:$0xff]
  %v26 = vld [vmem:[%s1 + $0x28] sm:$0xff]
  %v27 = vld [vmem:[%s1 + $0x30] sm:$0xff]
  %v28 = vld [vmem:[%s1 + $0x38] sm:$0xff]
  %v29 = vld [vmem:[%s1 + $0x40] sm:$0xff]
  %v30 = vld [vmem:[%s1 + $0x48] sm:$0xff]
  %v31 = vld [vmem:[%s1 + $0x50] sm:$0xff]
  %v32 = vld [vmem:[%s1 + $0x58] sm:$0xff]
  %v33 = vld [vmem:[%s1 + $0x60] sm:$0xff]
  %v34 = vld [vmem:[%s1 + $0x68] sm:$0xff]
  %v35 = vld [vmem:[%s1 + $0x70] sm:$0xff]
  %v36 = vld [vmem:[%s1 + $0x78] sm:$0xff]
  %v37 = vld [vmem:[%s1 + $0x80] sm:$0xff]
  %v38 = vld [vmem:[%s1 + $0x88] sm:$0xff]
  %v39 = vld [vmem:[%s1 + $0x90] sm:$0xff]
  %v40 = vld [vmem:[%s1 + $0x98] sm:$0xff]
  %v41 = vld [vmem:[%s1 + $0xa0] sm:$0xff]
  %v42 = vld [vmem:[%s1 + $0xa8] sm:$0xff]
  %v43 = vld [vmem:[%s1 + $0xb0] sm:$0xff]
  %v44 = vld [vmem:[%s1 + $0xb8] sm:$0xff]
  %v45 = vld [vmem:[%s1 + $0xc0] sm:$0xf]
  %v46 = vld [vmem:[%s1 + $0xc8] sm:$0xf]
  %v47 = vld [vmem:[%s2] sm:$0x3]
  %v49 = vlaneseq
  %v50 = vshrl.u32 %v49, 7
  %v51 = vsub.s32 0, %v50
  %v52 = vrot.slane %v47, %v51
  %v53 = vlaneseq
  %v54 = vshrl.u32 %v53, 7
  %v55 = vsub.s32 1, %v54
  %v56 = vrot.slane %v47, %v55
  %vm59 = vcmask 818176
  %v61 = vsel %vm59, %v20, 0
  %vm63 = vcmask 1043456
  %v65 = vsel %vm63, %v45, 0
  %v68 = vsel %vm63, %v46, 0
  %70 = vmatprep.subr.mxu0 %v22
  %71 = vmatpush1.msra.mxu0 %v21
  %72 = vmatprep.subr.mxu0 %v24
  %73 = vmatpush1.msra.mxu0 %v23
  %74 = vmatprep.subr.mxu0 %v26
  %75 = vmatpush1.msra.mxu0 %v25
  %76 = vmatprep.subr.mxu0 %v28
  %77 = vmatpush1.msra.mxu0 %v27
  %78 = vmatprep.subr.mxu0 %v30
  %79 = vmatpush1.msra.mxu0 %v29
  %80 = vmatprep.subr.mxu0 %v32
  %81 = vmatpush1.msra.mxu0 %v31
  %82 = vmatprep.subr.mxu0 %v34
  %83 = vmatpush1.msra.mxu0 %v33
  %84 = vmatprep.subr.mxu0 %v36
  %85 = vmatpush1.msra.mxu0 %v35
  %86 = vmatprep.subr.mxu0 %v38
  %87 = vmatpush1.msra.mxu0 %v37
  %88 = vmatprep.subr.mxu0 %v40
  %89 = vmatpush1.msra.mxu0 %v39
  %90 = vmatprep.subr.mxu0 %v42
  %91 = vmatpush1.msra.mxu0 %v41
  %92 = vmatprep.subr.mxu0 %v44
  %93 = vmatpush1.msra.mxu0 %v43
  %94 = vmatprep.subr.mxu0 %v68
  %95 = vmatpush1.msra.mxu0 %v65
  %96 = vmatprep.subr.mxu0 0.0
  %97 = vmatpush1.msra.mxu0 0.0
  %98 = vmatprep.subr.mxu0 0.0
  %99 = vmatpush1.msra.mxu0 0.0
  %100 = vmatprep.subr.mxu0 0.0
  %101 = vmatpush1.msra.mxu0 0.0
  %102 = vmatprep.subr.mxu0 0.0
  %103 = vmatpush1.msra.mxu0 0.0
  %104 = vmatprep.subr.mxu0 0.0
  %105 = vmatpush1.msra.mxu0 0.0
  %106 = vmatprep.subr.mxu0 0.0
  %107 = vmatpush1.msra.mxu0 0.0
  %108 = vmatprep.subr.mxu0 0.0
  %109 = vmatpush1.msra.mxu0 0.0
  %110 = vmatprep.subr.mxu0 0.0
  %111 = vmatpush1.msra.mxu0 0.0
  %112 = vmatprep.subr.mxu0 0.0
  %113 = vmatpush1.msra.mxu0 0.0
  %114 = vmatprep.subr.mxu0 0.0
  %115 = vmatpush1.msra.mxu0 0.0
  %116 = vmatprep.subr.mxu0 0.0
  %117 = vmatpush1.msra.mxu0 0.0
  %118 = vmatprep.subr.mxu0 0.0
  %119 = vmatpush1.msra.mxu0 0.0
  %120 = vmatprep.subr.mxu0 0.0
  %121 = vmatpush1.msra.mxu0 0.0
  %122 = vmatprep.subr.mxu0 0.0
  %123 = vmatpush1.msra.mxu0 0.0
  %124 = vmatprep.subr.mxu0 0.0
  %125 = vmatpush1.msra.mxu0 0.0
  %126 = vmatprep.subr.mxu0 0.0
  %127 = vmatpush1.msra.mxu0 0.0
  %128 = vmatprep.subr.mxu0 0.0
  %129 = vmatpush1.msra.mxu0 0.0
  %130 = vmatprep.subr.mxu0 0.0
  %131 = vmatpush1.msra.mxu0 0.0
  %132 = vmatprep.subr.mxu0 0.0
  %133 = vmatpush1.msra.mxu0 0.0
  %134 = vmatprep.mubr.f32.mxu0 0.0
  %135 = vmatmul.mubr.f32.gmra.mrb[0].mxu0 %v61
  %v136 = vpop.f32.mrb[0].mxu0
  %v137 = vadd.f32 %v52, %v136
  %v138 = vpop.f32.mrb[0].mxu0
  %v139 = vadd.f32 %v56, %v138
  %140 = vdwg.mxu0
  %v141 = vmax.f32 %v137, 0.0
  %v142 = vmax.f32 %v139, 0.0
  %v143 = vld [vmem:[%s3] sm:$0xff]
  %v144 = vld [vmem:[%s3 + $0x8] sm:$0xff]
  %v145 = vld [vmem:[%s3 + $0x10] sm:$0xff]
  %v146 = vld [vmem:[%s3 + $0x18] sm:$0xff]
  %v147 = vld [vmem:[%s3 + $0x20] sm:$0xff]
  %v148 = vld [vmem:[%s3 + $0x28] sm:$0xff]
  %v149 = vld [vmem:[%s3 + $0x30] sm:$0xff]
  %v150 = vld [vmem:[%s3 + $0x38] sm:$0xff]
  %v151 = vld [vmem:[%s3 + $0x40] sm:$0xff]
  %v152 = vld [vmem:[%s3 + $0x48] sm:$0xff]
  %v153 = vld [vmem:[%s3 + $0x50] sm:$0xff]
  %v154 = vld [vmem:[%s3 + $0x58] sm:$0xff]
  %v155 = vld [vmem:[%s3 + $0x60] sm:$0xff]
  %v156 = vld [vmem:[%s3 + $0x68] sm:$0xff]
  %v157 = vld [vmem:[%s3 + $0x70] sm:$0xff]
  %v158 = vld [vmem:[%s3 + $0x78] sm:$0xff]
  %v159 = vld [vmem:[%s3 + $0x80] sm:$0xff]
  %v160 = vld [vmem:[%s3 + $0x88] sm:$0xff]
  %v161 = vld [vmem:[%s3 + $0x90] sm:$0xff]
  %v162 = vld [vmem:[%s3 + $0x98] sm:$0xff]
  %v163 = vld [vmem:[%s3 + $0xa0] sm:$0xff]
  %v164 = vld [vmem:[%s3 + $0xa8] sm:$0xff]
  %v165 = vld [vmem:[%s3 + $0xb0] sm:$0xff]
  %v166 = vld [vmem:[%s3 + $0xb8] sm:$0xff]
  %v167 = vld [vmem:[%s3 + $0xc0] sm:$0xff]
  %v168 = vld [vmem:[%s3 + $0xc8] sm:$0xff]
  %v169 = vld [vmem:[%s3 + $0xd0] sm:$0xff]
  %v170 = vld [vmem:[%s3 + $0xd8] sm:$0xff]
  %v171 = vld [vmem:[%s3 + $0xe0] sm:$0xff]
  %v172 = vld [vmem:[%s3 + $0xe8] sm:$0xff]
  %v173 = vld [vmem:[%s3 + $0xf0] sm:$0xff]
  %v174 = vld [vmem:[%s3 + $0xf8] sm:$0xff]
  %v175 = vld [vmem:[%s4] sm:$0x1]
  %v177 = vlaneseq
  %v178 = vshrl.u32 %v177, 7
  %v179 = vsub.s32 0, %v178
  %v180 = vrot.slane %v175, %v179
  %182 = vmatprep.subr.mxu0 0.0
  %183 = vmatpush1.msra.mxu0 %v143
  %184 = vmatprep.subr.mxu0 0.0
  %185 = vmatpush1.msra.mxu0 %v144
  %186 = vmatprep.subr.mxu0 0.0
  %187 = vmatpush1.msra.mxu0 %v145
  %188 = vmatprep.subr.mxu0 0.0
  %189 = vmatpush1.msra.mxu0 %v146
  %190 = vmatprep.subr.mxu0 0.0
  %191 = vmatpush1.msra.mxu0 %v147
  %192 = vmatprep.subr.mxu0 0.0
  %193 = vmatpush1.msra.mxu0 %v148
  %194 = vmatprep.subr.mxu0 0.0
  %195 = vmatpush1.msra.mxu0 %v149
  %196 = vmatprep.subr.mxu0 0.0
  %197 = vmatpush1.msra.mxu0 %v150
  %198 = vmatprep.subr.mxu0 0.0
  %199 = vmatpush1.msra.mxu0 %v151
  %200 = vmatprep.subr.mxu0 0.0
  %201 = vmatpush1.msra.mxu0 %v152
  %202 = vmatprep.subr.mxu0 0.0
  %203 = vmatpush1.msra.mxu0 %v153
  %204 = vmatprep.subr.mxu0 0.0
  %205 = vmatpush1.msra.mxu0 %v154
  %206 = vmatprep.subr.mxu0 0.0
  %207 = vmatpush1.msra.mxu0 %v155
  %208 = vmatprep.subr.mxu0 0.0
  %209 = vmatpush1.msra.mxu0 %v156
  %210 = vmatprep.subr.mxu0 0.0
  %211 = vmatpush1.msra.mxu0 %v157
  %212 = vmatprep.subr.mxu0 0.0
  %213 = vmatpush1.msra.mxu0 %v158
  %214 = vmatprep.subr.mxu0 0.0
  %215 = vmatpush1.msra.mxu0 %v159
  %216 = vmatprep.subr.mxu0 0.0
  %217 = vmatpush1.msra.mxu0 %v160
  %218 = vmatprep.subr.mxu0 0.0
  %219 = vmatpush1.msra.mxu0 %v161
  %220 = vmatprep.subr.mxu0 0.0
  %221 = vmatpush1.msra.mxu0 %v162
  %222 = vmatprep.subr.mxu0 0.0
  %223 = vmatpush1.msra.mxu0 %v163
  %224 = vmatprep.subr.mxu0 0.0
  %225 = vmatpush1.msra.mxu0 %v164
  %226 = vmatprep.subr.mxu0 0.0
  %227 = vmatpush1.msra.mxu0 %v165
  %228 = vmatprep.subr.mxu0 0.0
  %229 = vmatpush1.msra.mxu0 %v166
  %230 = vmatprep.subr.mxu0 0.0
  %231 = vmatpush1.msra.mxu0 %v167
  %232 = vmatprep.subr.mxu0 0.0
  %233 = vmatpush1.msra.mxu0 %v168
  %234 = vmatprep.subr.mxu0 0.0
  %235 = vmatpush1.msra.mxu0 %v169
  %236 = vmatprep.subr.mxu0 0.0
  %237 = vmatpush1.msra.mxu0 %v170
  %238 = vmatprep.subr.mxu0 0.0
  %239 = vmatpush1.msra.mxu0 %v171
  %240 = vmatprep.subr.mxu0 0.0
  %241 = vmatpush1.msra.mxu0 %v172
  %242 = vmatprep.subr.mxu0 0.0
  %243 = vmatpush1.msra.mxu0 %v173
  %244 = vmatprep.subr.mxu0 0.0
  %245 = vmatpush1.msra.mxu0 %v174
  %246 = vmatprep.mubr.f32.mxu0 %v142
  %247 = vmatmul.mubr.f32.gmra.mrb[0].mxu0 %v141
  %v248 = vpop.f32.mrb[0].mxu0
  %v249 = vadd.f32 %v180, %v248
  %v250 = vpop.f32.mrb[0].mxu0
  %251 = vdwg.mxu0
  %vm252 = vcmask 15360
  %253 = vst.msk [vmem:[%s5] sm:$0xff] %vm252, %v249
  // Predicated region
  $region22: #{tpu_custom_call.1} parent=0 // pred_check
    _
  $region23: #{tpu_custom_call.1} parent=0 // pred_check_branch
    %255 = sbr.rel (0) target = $region25
  $region24: #{tpu_custom_call.1} parent=0 // pred_region
    _
  $region25: #{tpu_custom_call.1} parent=0 // pred_fallthru
    _
  // Predicated region
  $region26: #{tpu_custom_call.1} parent=0 // pred_check
    _
  $region27: #{tpu_custom_call.1} parent=0 // pred_check_branch
    %257 = sbr.rel (0) target = $region29
  $region28: #{tpu_custom_call.1} parent=0 // pred_region
    _
  $region29: #{tpu_custom_call.1} parent=0 // pred_fallthru
    _

</llo_original>
